<compile_context>
chip_gen: v5e
topology: v5e:2x2
jax: 0.10.0
libtpu: 0.0.40
codegen_flags: <defaults>
</compile_context>

<pallas_src>
import jax
import jax.numpy as jnp
from jax import lax
from jax.experimental import pallas as pl
from jax.experimental.pallas import tpu as pltpu

DROP_PROB = 0.1
BLOCK_SIZE = 5


def _dropblock_kernel(x_ref, keep_ref, o_ref):
    # x_ref / o_ref: (bb, rows, L) tile of x (lane dim = L, lane-dense when possible).
    # keep_ref:      (bb, 1, L) float32, already max-pooled and scaled by 1/(1-p).
    keep = keep_ref[...]                            # f32
    xv = x_ref[...].astype(jnp.float32)
    o_ref[...] = (xv * keep).astype(o_ref.dtype)    # sublane broadcast over rows


def _round_up(v, m):
    return (v + m - 1) // m * m


def _choose_layout(C, HW):
    """Fold G channels into the lane axis so L = G*HW is a multiple of 128.

    Returns (G, crows, L). Keeps lane axis = HW when already 128-aligned; falls
    back to G=1 (masked stores, still correct) if no divisor of C aligns."""
    if HW % 128 == 0:
        return 1, C, HW
    for g in range(1, C + 1):
        if C % g == 0 and (g * HW) % 128 == 0:
            return g, C // g, g * HW
    # TODO(synk): no channel grouping aligns the lane dim; stores stay masked here.
    return 1, C, HW


def _pick_channel_tile(crows, L, itemsize, B, target_bytes=4 << 20):
    """Sublane-aligned row tile dividing crows, keeping one x tile <= ~4 MiB."""
    if crows % 8 != 0:
        # TODO(synk): rows not a multiple of 8 -> sublane padding; small inputs hit
        # the single-block fast path instead, so this only affects rare odd-C cases.
        return crows
    best = 8
    tc = 8
    while tc <= crows:
        if crows % tc == 0 and tc * L * itemsize <= target_bytes:
            best = tc
        tc += 8
    # v7x megacore balance: prefer >= 4 total grid steps so both TensorCores get
    # pipelined work; shrink the tile (never below 8 rows) if needed.
    while best > 8 and B * (crows // best) < 4:
        nxt = None
        for t in range(best - 8, 7, -8):
            if crows % t == 0:
                nxt = t
                break
        if nxt is None:
            break
        best = nxt
    return best


def dropblock2d(x, key, drop_prob=DROP_PROB, block_size=BLOCK_SIZE, training=True):
    """Mirrors DropBlock2D.forward: identity in eval mode / drop_prob == 0."""
    if (not training) or drop_prob == 0:
        return x

    B, C, H, W = x.shape
    HW = H * W
    pad = block_size // 2
    gamma = drop_prob / (block_size ** 2)
    inv_keep = 1.0 / (1.0 - drop_prob)
    itemsize = x.dtype.itemsize

    # Tiny O(B*H*W) glue in plain JAX: Bernoulli(gamma) seed -> "same" max-pool ->
    # keep = (1 - mask) / (1 - p). Matches torch.rand(...) < gamma + F.max_pool2d.
    seed = (jax.random.uniform(key, (B, H, W)) < gamma).astype(jnp.float32)
    pooled = lax.reduce_window(
        seed, -jnp.inf, lax.max,
        window_dimensions=(1, block_size, block_size),
        window_strides=(1, 1, 1),
        padding=((0, 0), (pad, pad), (pad, pad)))
    keep = ((1.0 - pooled) * inv_keep).reshape(B, 1, HW)     # float32
    # TODO(synk): reference uses fixed 1/(1-p) scaling (not count-based renorm) and
    # gamma omits the paper's valid-region correction — intentionally mirrored.

    # Layout: fold G channels into the lane axis so the last dim is 128-aligned;
    # keep is tiled G times (still tiny) to match the folded rows.
    G, crows, L = _choose_layout(C, HW)
    x_flat = x.reshape(B, crows, L)
    keep_lane = keep if G == 1 else jnp.tile(keep, (1, 1, G))  # (B, 1, L)

    cost = pl.CostEstimate(
        flops=B * C * HW,
        transcendentals=0,
        bytes_accessed=2 * B * C * HW * itemsize + B * HW * 4)

    pad_l = _round_up(L, 128)

    # --- Single-block fast path: whole tensor comfortably in VMEM -> grid=(1,). ---
    full_x_bytes = B * _round_up(crows, 8) * pad_l * itemsize
    full_keep_bytes = B * 8 * pad_l * 4
    full_footprint = 2 * (2 * full_x_bytes + full_keep_bytes)   # double-buffered
    if full_footprint <= (16 << 20):
        vmem_limit = int(min(32 << 20, max(8 << 20, full_footprint + (2 << 20))))
        out = pl.pallas_call(
            _dropblock_kernel,
            out_shape=jax.ShapeDtypeStruct((B, crows, L), x.dtype),
            grid_spec=pltpu.PrefetchScalarGridSpec(
                num_scalar_prefetch=0,
                grid=(1,),
                in_specs=[
                    pl.BlockSpec((B, crows, L), lambda i: (0, 0, 0)),
                    pl.BlockSpec((B, 1, L), lambda i: (0, 0, 0)),
                ],
                out_specs=pl.BlockSpec((B, crows, L), lambda i: (0, 0, 0)),
            ),
            compiler_params=pltpu.CompilerParams(
                dimension_semantics=("parallel",),
                vmem_limit_bytes=vmem_limit),
            cost_estimate=cost,
        )(x_flat, keep_lane)
        return out.reshape(B, C, H, W)

    # --- General tiled path. ---
    TC = _pick_channel_tile(crows, L, itemsize, B)
    # Grid order matters: b outer, row-tile inner, so keep's block index (b, 0, 0)
    # is constant across consecutive steps and Pallas skips its re-DMA. Do not swap.
    grid = (B, crows // TC)

    tile_bytes = _round_up(TC, 8) * pad_l * itemsize
    keep_bytes = 8 * pad_l * 4
    vmem_limit = int(min(32 << 20,
                         max(8 << 20, 2 * (2 * tile_bytes + keep_bytes) + (4 << 20))))

    out = pl.pallas_call(
        _dropblock_kernel,
        out_shape=jax.ShapeDtypeStruct((B, crows, L), x.dtype),
        grid_spec=pltpu.PrefetchScalarGridSpec(
            num_scalar_prefetch=0,
            grid=grid,
            in_specs=[
                pl.BlockSpec((1, TC, L), lambda b, c: (b, c, 0)),
                pl.BlockSpec((1, 1, L), lambda b, c: (b, 0, 0)),
            ],
            out_specs=pl.BlockSpec((1, TC, L), lambda b, c: (b, c, 0)),
        ),
        compiler_params=pltpu.CompilerParams(
            dimension_semantics=("parallel", "parallel"),
            vmem_limit_bytes=vmem_limit),
        cost_estimate=cost,
    )(x_flat, keep_lane)
    return out.reshape(B, C, H, W)


def _ref_dropblock(x, key, drop_prob=DROP_PROB, block_size=BLOCK_SIZE):
    # Independent pure-JAX reference with identical semantics (same seed mask ->
    # shift-and-max "same" pool -> 1 - mask -> broadcast over C -> / (1 - p)).
    B, C, H, W = x.shape
    pad = block_size // 2
    gamma = drop_prob / (block_size ** 2)
    mask = (jax.random.uniform(key, (B, H, W)) < gamma).astype(jnp.float32)
    mp = jnp.pad(mask, ((0, 0), (pad, pad), (pad, pad)))
    pooled = jnp.max(
        jnp.stack([mp[:, i:i + H, j:j + W]
                   for i in range(block_size)
                   for j in range(block_size)], axis=0), axis=0)
    return x * (1.0 - pooled)[:, None, :, :] / (1.0 - drop_prob)


if __name__ == "__main__":
    key = jax.random.PRNGKey(0)
    kx, km, kx2, km2 = jax.random.split(key, 4)

    # Test 1: 16x16 maps (HW=256, already lane-dense) — single-block fast path.
    B, C, H, W = 2, 4, 16, 16
    x = jax.random.normal(kx, (B, C, H, W), dtype=jnp.float32)
    out = jax.block_until_ready(dropblock2d(x, km, training=True))
    assert out.shape == x.shape and out.dtype == x.dtype
    assert jnp.allclose(out, _ref_dropblock(x, km), atol=1e-6), "mismatch (16x16)"

    # Test 2: 8x8 maps (HW=64) — exercises the channel-group-into-lane fold
    # (G=2 -> lane dim 128) and the tiled keep broadcast.
    B2, C2, H2, W2 = 2, 4, 8, 8
    x2 = jax.random.normal(kx2, (B2, C2, H2, W2), dtype=jnp.float32)
    out2 = jax.block_until_ready(dropblock2d(x2, km2, training=True))
    assert jnp.allclose(out2, _ref_dropblock(x2, km2), atol=1e-6), "mismatch (8x8)"

    # Eval mode is identity.
    assert jnp.array_equal(dropblock2d(x, km, training=False), x)

    print("KERNEL_OK")
</pallas_src>

<mosaic_0001>
module attributes {stable_mosaic.version = 11 : i64} {
  func.func @_dropblock_kernel(%arg0: i32, %arg1: memref<2x4x256xf32, #tpu.memory_space<vmem>>, %arg2: memref<2x1x256xf32, #tpu.memory_space<vmem>>, %arg3: memref<2x4x256xf32, #tpu.memory_space<vmem>>) attributes {dimension_semantics = [#tpu.dimension_semantics<parallel>], iteration_bounds = array<i64: 1>, scalar_prefetch = 0 : i64, scratch_operands = 0 : i64, tpu.core_type = #tpu.core_type<tc>, window_params = [{pipeline_mode = #tpu.pipeline_mode<synchronous>, transform_indices = @transform_0, window_bounds = array<i64: 2, 4, 256>}, {pipeline_mode = #tpu.pipeline_mode<synchronous>, transform_indices = @transform_1, window_bounds = array<i64: 2, 1, 256>}, {pipeline_mode = #tpu.pipeline_mode<synchronous>, transform_indices = @transform_2, window_bounds = array<i64: 2, 4, 256>}]} {
    %c0 = arith.constant 0 : index
    %c0_0 = arith.constant 0 : index
    %c0_1 = arith.constant 0 : index
    %0 = vector.load %arg2[%c0, %c0_0, %c0_1] : memref<2x1x256xf32, #tpu.memory_space<vmem>>, vector<2x1x256xf32>
    %c0_2 = arith.constant 0 : index
    %c0_3 = arith.constant 0 : index
    %c0_4 = arith.constant 0 : index
    %1 = vector.load %arg1[%c0_2, %c0_3, %c0_4] : memref<2x4x256xf32, #tpu.memory_space<vmem>>, vector<2x4x256xf32>
    %2 = vector.broadcast %0 : vector<2x1x256xf32> to vector<2x4x256xf32>
    %3 = arith.mulf %1, %2 : vector<2x4x256xf32>
    %c0_5 = arith.constant 0 : index
    %c0_6 = arith.constant 0 : index
    %c0_7 = arith.constant 0 : index
    %4 = vector.load %arg3[%c0_5, %c0_6, %c0_7] : memref<2x4x256xf32, #tpu.memory_space<vmem>>, vector<2x4x256xf32>
    tpu.vector_store %arg3[%c0_5, %c0_6, %c0_7], %3 {strides = array<i32>} : memref<2x4x256xf32, #tpu.memory_space<vmem>>, vector<2x4x256xf32>,
    return
  }
  func.func @transform_0(%arg0: i32) -> (i32, i32, i32) {
    %c0_i32 = arith.constant 0 : i32
    %c0_i32_0 = arith.constant 0 : i32
    %c0_i32_1 = arith.constant 0 : i32
    %c0_i32_2 = arith.constant 0 : i32
    return %c0_i32, %c0_i32_0, %c0_i32_1 : i32, i32, i32
  }
  func.func @transform_1(%arg0: i32) -> (i32, i32, i32) {
    %c0_i32 = arith.constant 0 : i32
    %c0_i32_0 = arith.constant 0 : i32
    %c0_i32_1 = arith.constant 0 : i32
    %c0_i32_2 = arith.constant 0 : i32
    return %c0_i32, %c0_i32_0, %c0_i32_1 : i32, i32, i32
  }
  func.func @transform_2(%arg0: i32) -> (i32, i32, i32) {
    %c0_i32 = arith.constant 0 : i32
    %c0_i32_0 = arith.constant 0 : i32
    %c0_i32_1 = arith.constant 0 : i32
    %c0_i32_2 = arith.constant 0 : i32
    return %c0_i32, %c0_i32_0, %c0_i32_1 : i32, i32, i32
  }
}

</mosaic_0001>

<llo_original>
// kernel: tpu_custom_call.1
$region0: #{tpu_custom_call.1}
  #allocation0 [shape = 'u32[]', space=smem, size = 0x4, offset = 0x4, fixed_abs, tag = 'smem constant byte address 0x4 - core index']
  #allocation1 [shape = 'u32[72,128]{1,0:T(1,128)}', space=vmem, size = 0x9000, scoped, tag = 'internal scratch']
  %s0 = inlined_call_operand.hbm [shape: f32[2,4,256], index: 0, kind: input, shape index: {}]
  %s1 = inlined_call_operand.hbm [shape: f32[2,1,256], index: 1, kind: input, shape index: {}]
  %s2 = inlined_call_operand.hbm [shape: f32[2,4,256], index: 2, kind: output, shape index: {}]
  %s3 = sld [smem:[#allocation0]]
  $region26: #{tpu_custom_call.1} parent=0
    _
  %s5 = ssub.s32 1, %s3
  %s6 = scalar_select 0, %s5, %s3
  $region1: #{tpu_custom_call.1} parent=0
    #allocation2 [shape = 'u8[8192]{0}', space=vmem, size = 0x2000, scoped, tag = 'input window, operand 0, single buffered']
    #allocation3 [shape = 's32[1]{0}', space=sflag, size = 0x4, scoped, tag = 'scoped memory for tpu_custom_call.1']
    #allocation4 [shape = 's32[1]{0}', space=sflag, size = 0x4, scoped, tag = 'scoped memory for tpu_custom_call.1']
    #allocation5 [shape = 'u8[2048]{0}', space=vmem, size = 0x800, scoped, tag = 'input window, operand 1, single buffered']
    #allocation6 [shape = 's32[1]{0}', space=sflag, size = 0x4, scoped, tag = 'scoped memory for tpu_custom_call.1']
    #allocation7 [shape = 'u8[8192]{0}', space=vmem, size = 0x2000, scoped, tag = 'output window, operand 0, single buffered']
    %7 = vsyncpa [#allocation3], 0
    %8 = vsyncpa [#allocation6], 0
    %9 = vsyncpa [#allocation4], 0
    // Predicated region
    $region2: #{tpu_custom_call.1} parent=1 // pred_check
      _
    $region3: #{tpu_custom_call.1} parent=1 // pred_check_branch
      %11 = sbr.rel (0) target = $region5
    $region4: #{tpu_custom_call.1} parent=1 // pred_region
      %13 = vsyncadd [#allocation3], 0
      %s14 = sshll.u32 %s0, 4
      %s15 = int_to_ptr.hbm [resolvable:$true] %s14
      %s16 = sshll.u32 [#allocation2], 4
      %s17 = int_to_ptr.vmem [resolvable:$true] %s16
      %22 = dma.hbm_to_vmem [thread:$0]  %s15, 256, %s17, [#allocation3], 128, 128, 8
    $region5: #{tpu_custom_call.1} parent=1 // pred_fallthru
      _
    // Predicated region
    $region6: #{tpu_custom_call.1} parent=1 // pred_check
      _
    $region7: #{tpu_custom_call.1} parent=1 // pred_check_branch
      %24 = sbr.rel (0) target = $region9
    $region8: #{tpu_custom_call.1} parent=1 // pred_region
      %26 = vsyncadd [#allocation6], 0
      %s27 = sshll.u32 %s1, 4
      %s28 = int_to_ptr.hbm [resolvable:$true] %s27
      %s29 = sshll.u32 [#allocation5], 4
      %s30 = int_to_ptr.vmem [resolvable:$true] %s29
      %35 = dma.hbm_to_vmem [thread:$0]  %s28, 64, %s30, [#allocation6], 32, 32, 2
    $region9: #{tpu_custom_call.1} parent=1 // pred_fallthru
      _
    // Predicated region
    $region10: #{tpu_custom_call.1} parent=1 // pred_check
      _
    $region11: #{tpu_custom_call.1} parent=1 // pred_check_branch
      %37 = sbr.rel (0) target = $region13
    $region12: #{tpu_custom_call.1} parent=1 // pred_region
      %39 = dma.done [#allocation3], 256
    $region13: #{tpu_custom_call.1} parent=1 // pred_fallthru
      _
    // Predicated region
    $region14: #{tpu_custom_call.1} parent=1 // pred_check
      _
    $region15: #{tpu_custom_call.1} parent=1 // pred_check_branch
      %41 = sbr.rel (0) target = $region17
    $region16: #{tpu_custom_call.1} parent=1 // pred_region
      %43 = dma.done [#allocation6], 64
    $region17: #{tpu_custom_call.1} parent=1 // pred_fallthru
      _
    %v44 = vld [vmem:[#allocation5] sm:$0x3]
    %v45 = vld [vmem:[#allocation5 + $0x2] sm:$0x3]
    %v46 = vld [vmem:[#allocation2] sm:$0xff]
    %v47 = vld [vmem:[#allocation2 + $0x8] sm:$0xff]
    %v50 = vperm.slane %v44, 0
    %v51 = vperm.slane %v44, 1
    %v52 = vperm.slane %v45, 0
    %v53 = vperm.slane %v45, 1
    %v54 = vrot.slane %v51, 4
    %v55 = vrot.slane %v53, 4
    %vm56 = vcmask 1043456
    %v57 = vsel %vm56, %v50, %v54
    %v58 = vsel %vm56, %v52, %v55
    %v61 = vmul.f32 %v46, %v57
    %v62 = vmul.f32 %v47, %v58
    %63 = vst [vmem:[#allocation7] sm:$0xff] %v61
    %64 = vst [vmem:[#allocation7 + $0x8] sm:$0xff] %v62
    // Predicated region
    $region18: #{tpu_custom_call.1} parent=1 // pred_check
      _
    $region19: #{tpu_custom_call.1} parent=1 // pred_check_branch
      %66 = sbr.rel (0) target = $region21
    $region20: #{tpu_custom_call.1} parent=1 // pred_region
      %68 = vsyncadd [#allocation4], 0
      %s69 = sshll.u32 [#allocation7], 4
      %s70 = int_to_ptr.vmem [resolvable:$true] %s69
      %s71 = sshll.u32 %s2, 4
      %s72 = int_to_ptr.hbm [resolvable:$true] %s71
      %77 = dma.vmem_to_hbm [thread:$0]  %s70, 256, %s72, [#allocation4], 128, 128, 8
    $region21: #{tpu_custom_call.1} parent=1 // pred_fallthru
      _
    // Predicated region
    $region22: #{tpu_custom_call.1} parent=1 // pred_check
      _
    $region23: #{tpu_custom_call.1} parent=1 // pred_check_branch
      %79 = sbr.rel (0) target = $region25
    $region24: #{tpu_custom_call.1} parent=1 // pred_region
      %81 = dma.done [#allocation4], 256
    $region25: #{tpu_custom_call.1} parent=1 // pred_fallthru
      _
    %82 = vsyncpa [#allocation3], 1
    %83 = vsyncpa [#allocation6], 1
    %84 = vsyncpa [#allocation4], 1

</llo_original>
